<compile_context>
chip_gen: v5e
topology: v5e:2x2
jax: 0.10.0
libtpu: 0.0.40
codegen_flags: <defaults>
</compile_context>

<pallas_src>
import jax
import jax.numpy as jnp
from jax.experimental import pallas as pl
from jax.experimental.pallas import tpu as pltpu

_LANE = 128


def _round_up(x, m):
    return ((x + m - 1) // m) * m


def _pad2(a, rows, cols):
    r, c = a.shape
    if (r, c) == (rows, cols):
        return a
    return jnp.pad(a, ((0, rows - r), (0, cols - c)))


# ---------------------------------------------------------------------------
# Kernel
# ---------------------------------------------------------------------------
def _ae_kernel(x_ref, w1_ref, b1_ref, w2_ref, b2_ref,
               w3_ref, b3_ref, w4_ref, b4_ref, o_ref):
    # x arrives f32; cast to bf16 in-kernel (VPU cast hides under MXU work).
    x = x_ref[...].astype(jnp.bfloat16)

    # Encoder.
    h1 = jnp.dot(x, w1_ref[...], preferred_element_type=jnp.float32) + b1_ref[...]
    h1 = jnp.maximum(h1, 0.0).astype(jnp.bfloat16)                 # ReLU(True)
    z = jnp.dot(h1, w2_ref[...], preferred_element_type=jnp.float32) + b2_ref[...]

    # Decoder. Latent z and w3 stay f32: K = lat_p is tiny, so the f32 MXU
    # passes are ~free and the latent is not re-quantized to bf16.
    h2 = jnp.dot(z, w3_ref[...], preferred_element_type=jnp.float32) + b3_ref[...]
    h2 = jnp.maximum(h2, 0.0).astype(jnp.bfloat16)                 # ReLU(True)
    y = jnp.dot(h2, w4_ref[...], preferred_element_type=jnp.float32) + b4_ref[...]

    o_ref[...] = y.astype(o_ref.dtype)


# ---------------------------------------------------------------------------
# One-time parameter packing (pad to 128 lanes, cast matmul operands)
# ---------------------------------------------------------------------------
def pack_params(params):
    """Pad all feature dims to multiples of 128 and cast matmul operands.

    w1..w4 are stored (in, out) = torch weight.T. Zero padding is exact for
    this forward pass. Call once; reuse the result for every forward.
    """
    n_input, n_hidden_1 = params["w1"].shape
    n_latent = params["w2"].shape[1]
    n_in_p = _round_up(n_input, _LANE)
    h1_p = _round_up(n_hidden_1, _LANE)
    lat_p = _round_up(n_latent, _LANE)

    packed = dict(
        w1=_pad2(params["w1"].astype(jnp.float32), n_in_p, h1_p).astype(jnp.bfloat16),
        w2=_pad2(params["w2"].astype(jnp.float32), h1_p, lat_p).astype(jnp.bfloat16),
        w3=_pad2(params["w3"].astype(jnp.float32), lat_p, h1_p),   # f32 (tiny, accuracy)
        w4=_pad2(params["w4"].astype(jnp.float32), h1_p, n_in_p).astype(jnp.bfloat16),
        b1=_pad2(params["b1"].astype(jnp.float32), 1, h1_p),
        b2=_pad2(params["b2"].astype(jnp.float32), 1, lat_p),
        b3=_pad2(params["b3"].astype(jnp.float32), 1, h1_p),
        b4=_pad2(params["b4"].astype(jnp.float32), 1, n_in_p),
    )
    meta = dict(n_input=n_input, n_hidden_1=n_hidden_1, n_latent=n_latent,
                n_in_p=n_in_p, h1_p=h1_p, lat_p=lat_p)
    return packed, meta


def _resident_spec(shape):
    """Grid-invariant operand: keep resident in VMEM, single-buffered."""
    idx = lambda i: (0, 0)
    try:
        return pl.BlockSpec(shape, idx, pipeline_mode=pl.Buffered(buffer_count=1))
    except TypeError:  # very old JAX without pipeline_mode: fall back to default
        return pl.BlockSpec(shape, idx)


# ---------------------------------------------------------------------------
# Forward
# ---------------------------------------------------------------------------
def autoencoder_forward(x, packed, meta, *, block_b=None,
                        out_dtype=jnp.float32, unpad=True):
    """x: (B, n_input) f32. packed/meta: from pack_params().

    out_dtype=jnp.bfloat16 and/or unpad=False reduce HBM writeback when the
    consumer tolerates bf16 / padded output (padded rows & cols must then be
    masked by the caller).
    """
    B, n_input = x.shape
    assert n_input == meta["n_input"]
    n_in_p, h1_p, lat_p = meta["n_in_p"], meta["h1_p"], meta["lat_p"]

    w1, w2, w3, w4 = packed["w1"], packed["w2"], packed["w3"], packed["w4"]
    b1, b2, b3, b4 = packed["b1"], packed["b2"], packed["b3"], packed["b4"]

    weight_bytes = ((w1.size + w2.size + w4.size) * 2 + w3.size * 4
                    + (b1.size + b2.size + b3.size + b4.size) * 4)

    out_bytes = jnp.dtype(out_dtype).itemsize
    # Per-row VMEM: double-buffered f32 x tile + out tile, plus live f32/bf16
    # intermediates (h1, z, h2, y + bf16 copies).
    per_row = (2 * n_in_p * 4
               + 2 * n_in_p * out_bytes
               + (2 * h1_p + lat_p + n_in_p) * 6)

    # Generation-aware VMEM budget (v7x: 64 MiB/TC, v5e/v6e: 128 MiB).
    try:
        vmem_cap = int(pltpu.get_tpu_info().vmem_capacity_bytes)
    except Exception:
        vmem_cap = 64 * 1024 * 1024   # conservative (v7x) fallback
    budget = int(0.75 * vmem_cap)

    if block_b is None:
        cap_rows = max(16, (budget - weight_bytes) // per_row)
        cap_rows = min(2048, cap_rows)
        cap_rows = (cap_rows // 256) * 256 if cap_rows >= 256 else (cap_rows // 16) * 16
        cap_rows = max(16, cap_rows)
        # >=2 grid steps whenever B allows it (v7x megacore shards the
        # "parallel" batch axis across its 2 TensorCores); tight n_steps
        # minimizes batch-padding waste.
        n_steps = max(2 if B > 16 else 1, pl.cdiv(B, cap_rows))
        block_b = pl.cdiv(B, n_steps)
        align = 256 if block_b >= 256 else 16
        block_b = min(_round_up(block_b, align), cap_rows)
    # Normalize explicit block_b too: multiples of 256 once large (fills the
    # 256-row MXU pass on v6e/v7x), multiples of 16 otherwise.
    align = 256 if block_b >= 256 else 16
    block_b = max(16, _round_up(block_b, align))

    B_pad = _round_up(B, block_b)
    grid = (B_pad // block_b,)

    # Only activation prep in the wrapper: pad rows/cols (exact; f32, no cast).
    xb = _pad2(x.astype(jnp.float32), B_pad, n_in_p)

    x_map = lambda i: (i, 0)

    flops = 2 * B_pad * (n_in_p * h1_p + h1_p * lat_p + lat_p * h1_p + h1_p * n_in_p)
    bytes_accessed = B_pad * n_in_p * (4 + out_bytes) + weight_bytes

    # vmem_est already counts double buffering -> no extra 2x multiplier.
    vmem_limit = weight_bytes + block_b * per_row + 4 * 1024 * 1024
    vmem_limit = int(min(budget, max(16 * 1024 * 1024, vmem_limit)))

    out = pl.pallas_call(
        _ae_kernel,
        out_shape=jax.ShapeDtypeStruct((B_pad, n_in_p), out_dtype),
        grid_spec=pltpu.PrefetchScalarGridSpec(
            num_scalar_prefetch=0,
            grid=grid,
            in_specs=[
                pl.BlockSpec((block_b, n_in_p), x_map),
                _resident_spec(w1.shape), _resident_spec(b1.shape),
                _resident_spec(w2.shape), _resident_spec(b2.shape),
                _resident_spec(w3.shape), _resident_spec(b3.shape),
                _resident_spec(w4.shape), _resident_spec(b4.shape),
            ],
            out_specs=pl.BlockSpec((block_b, n_in_p), x_map),
        ),
        compiler_params=pltpu.CompilerParams(
            dimension_semantics=("parallel",),
            vmem_limit_bytes=vmem_limit),
        cost_estimate=pl.CostEstimate(
            flops=int(flops), transcendentals=0, bytes_accessed=int(bytes_accessed)),
    )(xb, w1, b1, w2, b2, w3, b3, w4, b4)

    if unpad:
        return out[:B, :n_input]
    return out   # caller must mask padded rows/cols


# ---------------------------------------------------------------------------
# Init + references
# ---------------------------------------------------------------------------
def init_params(key, n_input, n_hidden_1, n_latent):
    """Deterministic init. Weights stored (in, out) = torch weight.T."""
    ks = jax.random.split(key, 8)

    def linear(kw, kb, fan_in, fan_out):
        bound = 1.0 / jnp.sqrt(fan_in)   # torch default U(-1/sqrt(fan_in), ...)
        w = jax.random.uniform(kw, (fan_in, fan_out), jnp.float32, -bound, bound)
        b = jax.random.uniform(kb, (1, fan_out), jnp.float32, -bound, bound)
        return w, b

    w1, b1 = linear(ks[0], ks[1], n_input, n_hidden_1)
    w2, b2 = linear(ks[2], ks[3], n_hidden_1, n_latent)
    w3, b3 = linear(ks[4], ks[5], n_latent, n_hidden_1)
    w4, b4 = linear(ks[6], ks[7], n_hidden_1, n_input)
    return dict(w1=w1, b1=b1, w2=w2, b2=b2, w3=w3, b3=b3, w4=w4, b4=b4)


def reference_forward_f32(x, p):
    h = jnp.maximum(x @ p["w1"] + p["b1"], 0.0)
    z = h @ p["w2"] + p["b2"]
    h2 = jnp.maximum(z @ p["w3"] + p["b3"], 0.0)
    return h2 @ p["w4"] + p["b4"]


def reference_forward_mixed(x, p):
    """Emulates the kernel's precision recipe (bf16 operands, f32 accumulation,
    f32 latent path)."""
    bf = jnp.bfloat16
    d_bf = lambda a, w: jnp.dot(a.astype(bf), w.astype(bf),
                                preferred_element_type=jnp.float32)
    h1 = jnp.maximum(d_bf(x, p["w1"]) + p["b1"], 0.0)
    z = d_bf(h1, p["w2"]) + p["b2"]
    h2 = jnp.maximum(jnp.dot(z, p["w3"].astype(jnp.float32),
                             preferred_element_type=jnp.float32) + p["b3"], 0.0)
    return d_bf(h2, p["w4"]) + p["b4"]


if __name__ == "__main__":
    # Small demo shapes (exercise both lane padding and batch padding).
    n_input, n_hidden_1, n_latent = 100, 64, 32
    batch = 24

    key = jax.random.PRNGKey(0)
    kx, kp = jax.random.split(key)
    x = jax.random.normal(kx, (batch, n_input), jnp.float32)
    params = init_params(kp, n_input, n_hidden_1, n_latent)

    # Pack once (pad + cast); reuse for every forward call.
    packed, meta = pack_params(params)
    packed = jax.tree_util.tree_map(jax.block_until_ready, packed)

    out = jax.block_until_ready(autoencoder_forward(x, packed, meta))
    assert out.shape == (batch, n_input)

    ref_mixed = reference_forward_mixed(x, params)   # same precision recipe as kernel
    ref_f32 = reference_forward_f32(x, params)       # full-f32 reference
    assert jnp.allclose(out, ref_mixed, atol=2e-2, rtol=2e-2), "mismatch vs mixed-precision reference"
    assert jnp.allclose(out, ref_f32, atol=5e-2, rtol=5e-2), "mismatch vs f32 reference"

    print("KERNEL_OK")
</pallas_src>

<mosaic_0001>
module attributes {stable_mosaic.version = 11 : i64} {
  func.func @_ae_kernel(%arg0: i32, %arg1: memref<16x128xf32, #tpu.memory_space<vmem>>, %arg2: memref<128x128xbf16, #tpu.memory_space<vmem>>, %arg3: memref<1x128xf32, #tpu.memory_space<vmem>>, %arg4: memref<128x128xbf16, #tpu.memory_space<vmem>>, %arg5: memref<1x128xf32, #tpu.memory_space<vmem>>, %arg6: memref<128x128xf32, #tpu.memory_space<vmem>>, %arg7: memref<1x128xf32, #tpu.memory_space<vmem>>, %arg8: memref<128x128xbf16, #tpu.memory_space<vmem>>, %arg9: memref<1x128xf32, #tpu.memory_space<vmem>>, %arg10: memref<16x128xf32, #tpu.memory_space<vmem>>) attributes {dimension_semantics = [#tpu.dimension_semantics<parallel>], iteration_bounds = array<i64: 2>, scalar_prefetch = 0 : i64, scratch_operands = 0 : i64, tpu.core_type = #tpu.core_type<tc>, window_params = [{transform_indices = @transform_0, window_bounds = array<i64: 16, 128>}, {pipeline_mode = #tpu.pipeline_mode<synchronous>, transform_indices = @transform_1, window_bounds = array<i64: 128, 128>}, {pipeline_mode = #tpu.pipeline_mode<synchronous>, transform_indices = @transform_2, window_bounds = array<i64: 1, 128>}, {pipeline_mode = #tpu.pipeline_mode<synchronous>, transform_indices = @transform_3, window_bounds = array<i64: 128, 128>}, {pipeline_mode = #tpu.pipeline_mode<synchronous>, transform_indices = @transform_4, window_bounds = array<i64: 1, 128>}, {pipeline_mode = #tpu.pipeline_mode<synchronous>, transform_indices = @transform_5, window_bounds = array<i64: 128, 128>}, {pipeline_mode = #tpu.pipeline_mode<synchronous>, transform_indices = @transform_6, window_bounds = array<i64: 1, 128>}, {pipeline_mode = #tpu.pipeline_mode<synchronous>, transform_indices = @transform_7, window_bounds = array<i64: 128, 128>}, {pipeline_mode = #tpu.pipeline_mode<synchronous>, transform_indices = @transform_8, window_bounds = array<i64: 1, 128>}, {transform_indices = @transform_9, window_bounds = array<i64: 16, 128>}]} {
    %c0 = arith.constant 0 : index
    %c0_0 = arith.constant 0 : index
    %0 = vector.load %arg1[%c0, %c0_0] : memref<16x128xf32, #tpu.memory_space<vmem>>, vector<16x128xf32>
    %1 = arith.truncf %0 : vector<16x128xf32> to vector<16x128xbf16>
    %c0_1 = arith.constant 0 : index
    %c0_2 = arith.constant 0 : index
    %2 = vector.load %arg2[%c0_1, %c0_2] : memref<128x128xbf16, #tpu.memory_space<vmem>>, vector<128x128xbf16>
    %cst = arith.constant dense<0.000000e+00> : vector<16x128xf32>
    %3 = tpu.matmul %1, %2, %cst {dimension_numbers = #tpu.dot_dimension_numbers<[1], [0], [0], [1], [0, 0, 1, 1], [], []>} : vector<16x128xbf16>, vector<128x128xbf16>, vector<16x128xf32> -> vector<16x128xf32>
    %c0_3 = arith.constant 0 : index
    %c0_4 = arith.constant 0 : index
    %4 = vector.load %arg3[%c0_3, %c0_4] : memref<1x128xf32, #tpu.memory_space<vmem>>, vector<1x128xf32>
    %5 = vector.broadcast %4 : vector<1x128xf32> to vector<16x128xf32>
    %6 = arith.addf %3, %5 : vector<16x128xf32>
    %cst_5 = arith.constant 0.000000e+00 : f32
    %7 = vector.broadcast %cst_5 : f32 to vector<16x128xf32>
    %8 = arith.maximumf %6, %7 : vector<16x128xf32>
    %9 = arith.truncf %8 : vector<16x128xf32> to vector<16x128xbf16>
    %c0_6 = arith.constant 0 : index
    %c0_7 = arith.constant 0 : index
    %10 = vector.load %arg4[%c0_6, %c0_7] : memref<128x128xbf16, #tpu.memory_space<vmem>>, vector<128x128xbf16>
    %cst_8 = arith.constant dense<0.000000e+00> : vector<16x128xf32>
    %11 = tpu.matmul %9, %10, %cst_8 {dimension_numbers = #tpu.dot_dimension_numbers<[1], [0], [0], [1], [0, 0, 1, 1], [], []>} : vector<16x128xbf16>, vector<128x128xbf16>, vector<16x128xf32> -> vector<16x128xf32>
    %c0_9 = arith.constant 0 : index
    %c0_10 = arith.constant 0 : index
    %12 = vector.load %arg5[%c0_9, %c0_10] : memref<1x128xf32, #tpu.memory_space<vmem>>, vector<1x128xf32>
    %13 = vector.broadcast %12 : vector<1x128xf32> to vector<16x128xf32>
    %14 = arith.addf %11, %13 : vector<16x128xf32>
    %c0_11 = arith.constant 0 : index
    %c0_12 = arith.constant 0 : index
    %15 = vector.load %arg6[%c0_11, %c0_12] : memref<128x128xf32, #tpu.memory_space<vmem>>, vector<128x128xf32>
    %cst_13 = arith.constant dense<0.000000e+00> : vector<16x128xf32>
    %16 = tpu.matmul %14, %15, %cst_13 {dimension_numbers = #tpu.dot_dimension_numbers<[1], [0], [0], [1], [0, 0, 1, 1], [], []>} : vector<16x128xf32>, vector<128x128xf32>, vector<16x128xf32> -> vector<16x128xf32>
    %c0_14 = arith.constant 0 : index
    %c0_15 = arith.constant 0 : index
    %17 = vector.load %arg7[%c0_14, %c0_15] : memref<1x128xf32, #tpu.memory_space<vmem>>, vector<1x128xf32>
    %18 = vector.broadcast %17 : vector<1x128xf32> to vector<16x128xf32>
    %19 = arith.addf %16, %18 : vector<16x128xf32>
    %cst_16 = arith.constant 0.000000e+00 : f32
    %20 = vector.broadcast %cst_16 : f32 to vector<16x128xf32>
    %21 = arith.maximumf %19, %20 : vector<16x128xf32>
    %22 = arith.truncf %21 : vector<16x128xf32> to vector<16x128xbf16>
    %c0_17 = arith.constant 0 : index
    %c0_18 = arith.constant 0 : index
    %23 = vector.load %arg8[%c0_17, %c0_18] : memref<128x128xbf16, #tpu.memory_space<vmem>>, vector<128x128xbf16>
    %cst_19 = arith.constant dense<0.000000e+00> : vector<16x128xf32>
    %24 = tpu.matmul %22, %23, %cst_19 {dimension_numbers = #tpu.dot_dimension_numbers<[1], [0], [0], [1], [0, 0, 1, 1], [], []>} : vector<16x128xbf16>, vector<128x128xbf16>, vector<16x128xf32> -> vector<16x128xf32>
    %c0_20 = arith.constant 0 : index
    %c0_21 = arith.constant 0 : index
    %25 = vector.load %arg9[%c0_20, %c0_21] : memref<1x128xf32, #tpu.memory_space<vmem>>, vector<1x128xf32>
    %26 = vector.broadcast %25 : vector<1x128xf32> to vector<16x128xf32>
    %27 = arith.addf %24, %26 : vector<16x128xf32>
    %c0_22 = arith.constant 0 : index
    %c0_23 = arith.constant 0 : index
    %28 = vector.load %arg10[%c0_22, %c0_23] : memref<16x128xf32, #tpu.memory_space<vmem>>, vector<16x128xf32>
    tpu.vector_store %arg10[%c0_22, %c0_23], %27 {strides = array<i32>} : memref<16x128xf32, #tpu.memory_space<vmem>>, vector<16x128xf32>,
    return
  }
  func.func @transform_0(%arg0: i32) -> (i32, i32) {
    %c0_i32 = arith.constant 0 : i32
    %c0_i32_0 = arith.constant 0 : i32
    return %arg0, %c0_i32 : i32, i32
  }
  func.func @transform_1(%arg0: i32) -> (i32, i32) {
    %c0_i32 = arith.constant 0 : i32
    %c0_i32_0 = arith.constant 0 : i32
    %c0_i32_1 = arith.constant 0 : i32
    return %c0_i32, %c0_i32_0 : i32, i32
  }
  func.func @transform_2(%arg0: i32) -> (i32, i32) {
    %c0_i32 = arith.constant 0 : i32
    %c0_i32_0 = arith.constant 0 : i32
    %c0_i32_1 = arith.constant 0 : i32
    return %c0_i32, %c0_i32_0 : i32, i32
  }
  func.func @transform_3(%arg0: i32) -> (i32, i32) {
    %c0_i32 = arith.constant 0 : i32
    %c0_i32_0 = arith.constant 0 : i32
    %c0_i32_1 = arith.constant 0 : i32
    return %c0_i32, %c0_i32_0 : i32, i32
  }
  func.func @transform_4(%arg0: i32) -> (i32, i32) {
    %c0_i32 = arith.constant 0 : i32
    %c0_i32_0 = arith.constant 0 : i32
    %c0_i32_1 = arith.constant 0 : i32
    return %c0_i32, %c0_i32_0 : i32, i32
  }
  func.func @transform_5(%arg0: i32) -> (i32, i32) {
    %c0_i32 = arith.constant 0 : i32
    %c0_i32_0 = arith.constant 0 : i32
    %c0_i32_1 = arith.constant 0 : i32
    return %c0_i32, %c0_i32_0 : i32, i32
  }
  func.func @transform_6(%arg0: i32) -> (i32, i32) {
    %c0_i32 = arith.constant 0 : i32
    %c0_i32_0 = arith.constant 0 : i32
    %c0_i32_1 = arith.constant 0 : i32
    return %c0_i32, %c0_i32_0 : i32, i32
  }
  func.func @transform_7(%arg0: i32) -> (i32, i32) {
    %c0_i32 = arith.constant 0 : i32
    %c0_i32_0 = arith.constant 0 : i32
    %c0_i32_1 = arith.constant 0 : i32
    return %c0_i32, %c0_i32_0 : i32, i32
  }
  func.func @transform_8(%arg0: i32) -> (i32, i32) {
    %c0_i32 = arith.constant 0 : i32
    %c0_i32_0 = arith.constant 0 : i32
    %c0_i32_1 = arith.constant 0 : i32
    return %c0_i32, %c0_i32_0 : i32, i32
  }
  func.func @transform_9(%arg0: i32) -> (i32, i32) {
    %c0_i32 = arith.constant 0 : i32
    %c0_i32_0 = arith.constant 0 : i32
    return %arg0, %c0_i32 : i32, i32
  }
}

</mosaic_0001>

<llo_original>
// kernel: tpu_custom_call.1
$region0: #{tpu_custom_call.1}
  #allocation0 [shape = 'u32[]', space=smem, size = 0x4, offset = 0x4, fixed_abs, tag = 'smem constant byte address 0x4 - core index']
  #allocation1 [shape = 'u32[72,128]{1,0:T(1,128)}', space=vmem, size = 0x9000, scoped, tag = 'internal scratch']
  %s0 = inlined_call_operand.hbm [shape: f32[32,128], index: 0, kind: input, shape index: {}]
  %s1 = inlined_call_operand.hbm [shape: bf16[128,128], index: 1, kind: input, shape index: {}]
  %s2 = inlined_call_operand.vmem [shape: f32[1,128], index: 2, kind: input, shape index: {}]
  %s3 = inlined_call_operand.hbm [shape: bf16[128,128], index: 3, kind: input, shape index: {}]
  %s4 = inlined_call_operand.vmem [shape: f32[1,128], index: 4, kind: input, shape index: {}]
  %s5 = inlined_call_operand.hbm [shape: f32[128,128], index: 5, kind: input, shape index: {}]
  %s6 = inlined_call_operand.vmem [shape: f32[1,128], index: 6, kind: input, shape index: {}]
  %s7 = inlined_call_operand.hbm [shape: bf16[128,128], index: 7, kind: input, shape index: {}]
  %s8 = inlined_call_operand.vmem [shape: f32[1,128], index: 8, kind: input, shape index: {}]
  %s9 = inlined_call_operand.hbm [shape: f32[32,128], index: 9, kind: output, shape index: {}]
  %s10 = sld [smem:[#allocation0]]
  $region89: #{tpu_custom_call.1} parent=0
    _
  %s12 = ssub.s32 1, %s10
  %s13 = scalar_select 0, %s12, %s10
  $region1: #{tpu_custom_call.1} parent=0
    #allocation2 [shape = 'u8[16384]{0}', space=vmem, size = 0x4000, scoped, tag = 'input window, operand 0']
    #allocation3 [shape = 's32[2]{0}', space=sflag, size = 0x8, scoped, tag = 'scoped memory for tpu_custom_call.1']
    #allocation4 [shape = 's32[2]{0}', space=sflag, size = 0x8, scoped, tag = 'scoped memory for tpu_custom_call.1']
    #allocation5 [shape = 'u8[32768]{0}', space=vmem, size = 0x8000, scoped, tag = 'input window, operand 1, single buffered']
    #allocation6 [shape = 's32[1]{0}', space=sflag, size = 0x4, scoped, tag = 'scoped memory for tpu_custom_call.1']
    #allocation7 [shape = 'u8[32768]{0}', space=vmem, size = 0x8000, scoped, tag = 'input window, operand 3, single buffered']
    #allocation8 [shape = 'u8[65536]{0}', space=vmem, size = 0x10000, scoped, tag = 'input window, operand 5, single buffered']
    #allocation9 [shape = 's32[1]{0}', space=sflag, size = 0x4, scoped, tag = 'scoped memory for tpu_custom_call.1']
    #allocation10 [shape = 'u8[32768]{0}', space=vmem, size = 0x8000, scoped, tag = 'input window, operand 7, single buffered']
    #allocation11 [shape = 'u8[16384]{0}', space=vmem, size = 0x4000, scoped, tag = 'output window, operand 0']
    %14 = vsyncpa [#allocation3], 0
    %s15 = scalar_lea.sflag [#allocation3], 1
    %16 = vsyncpa %s15, 0
    %17 = vsyncpa [#allocation6], 0
    %18 = vsyncpa [#allocation9], 0
    %19 = vsyncpa [#allocation4], 0
    %s20 = scalar_lea.sflag [#allocation4], 1
    %21 = vsyncpa %s20, 0
    loop: start=0, step=1, limit=4
    $region2: #{tpu_custom_call.1} parent=1 // loop_pre_header
      _
    $region3: #{tpu_custom_call.1} parent=1 // loop_header
      %s23 = sphi 0, %s27
      %p24 = scmp.ge.s32.totalorder %s23, 4
      %s33 = sphi 0, %s35
      %s36 = sphi 0, %s33
      %s37 = sphi 0, %s36
      %s53 = sphi 0, %s37
      %s57 = sphi 0, %s57
      %s59 = sphi 0, %s57
      %s60 = sphi 0, %s59
      %s74 = sphi 0, %s60
      %s78 = sphi 0, %s78
      %s80 = sphi 0, %s78
      %s81 = sphi 0, %s80
      %s95 = sphi 0, %s81
      %s99 = sphi 0, %s99
      %s101 = sphi 0, %s99
      %s102 = sphi 0, %s101
      %s116 = sphi 0, %s102
      %s120 = sphi 0, %s120
      %s122 = sphi 0, %s120
      %s123 = sphi 0, %s122
      %s137 = sphi 0, %s123
      %s141 = sphi 0, %s141
      %s143 = sphi 0, %s141
      %s144 = sphi 0, %s143
      %s158 = sphi 0, %s144
      %s162 = sphi 0, %s162
      %s164 = sphi 0, %s162
      %s165 = sphi 0, %s164
      %s179 = sphi 0, %s165
      %s183 = sphi 0, %s183
      %s185 = sphi 0, %s183
      %s186 = sphi 0, %s185
      %s200 = sphi 0, %s186
      %s204 = sphi 0, %s204
      %s206 = sphi 0, %s204
      %s207 = sphi 0, %s206
      %s221 = sphi 0, %s207
      %s227 = sphi 0, %s229
      %s230 = sphi 0, %s227
      %s231 = sphi 0, %s230
      %s247 = sphi 0, %s231
    $region4: #{tpu_custom_call.1} parent=1 // loop_header_branch
      %26 = sbr.rel (%p24) target = $region8
    $region5: #{tpu_custom_call.1} parent=1 // loop_body
      %s28 = ssub.s32 %s23, 1
      %s29 = ssub.s32 %s23, 2
      %s30 = sadd.s32 %s23, 1
      %s31 = ssub.s32 %s23, %s30
      %p32 = scmp.eq.s32.totalorder %s31, 0
      %s34 = sadd.s32 %s33, 1
      %s35 = scalar_select %p32, %s33, %s34
      %p38 = pneg %p32
      %p39 = scmp.eq.s32.totalorder %s23, 1
      %p40 = por %p38, %p39
      %p41 = scmp.ne.s32.totalorder %s33, %s36
      %p42 = scmp.eq.s32.totalorder %s23, 0
      %p43 = por %p41, %p42
      %p44 = scmp.ne.s32.totalorder %s33, %s36
      %p45 = scmp.eq.s32.totalorder %s28, 1
      %p46 = por %p44, %p45
      %p47 = scmp.ne.s32.totalorder %s36, %s37
      %p48 = scmp.eq.s32.totalorder %s28, 0
      %p49 = por %p47, %p48
      %p50 = scmp.ne.s32.totalorder %s36, %s37
      %p51 = scmp.eq.s32.totalorder %s29, 1
      %p52 = por %p50, %p51
      %p54 = scmp.ne.s32.totalorder %s37, %s53
      %p55 = scmp.eq.s32.totalorder %s29, 0
      %p56 = por %p54, %p55
      %s58 = sadd.s32 %s57, 1
      %p61 = scmp.eq.s32.totalorder %s23, 1
      %p62 = scmp.ne.s32.totalorder %s57, %s59
      %p63 = scmp.eq.s32.totalorder %s23, 0
      %p64 = por %p62, %p63
      %p65 = scmp.ne.s32.totalorder %s57, %s59
      %p66 = scmp.eq.s32.totalorder %s28, 1
      %p67 = por %p65, %p66
      %p68 = scmp.ne.s32.totalorder %s59, %s60
      %p69 = scmp.eq.s32.totalorder %s28, 0
      %p70 = por %p68, %p69
      %p71 = scmp.ne.s32.totalorder %s59, %s60
      %p72 = scmp.eq.s32.totalorder %s29, 1
      %p73 = por %p71, %p72
      %p75 = scmp.ne.s32.totalorder %s60, %s74
      %p76 = scmp.eq.s32.totalorder %s29, 0
      %p77 = por %p75, %p76
      %s79 = sadd.s32 %s78, 1
      %p82 = scmp.eq.s32.totalorder %s23, 1
      %p83 = scmp.ne.s32.totalorder %s78, %s80
      %p84 = scmp.eq.s32.totalorder %s23, 0
      %p85 = por %p83, %p84
      %p86 = scmp.ne.s32.totalorder %s78, %s80
      %p87 = scmp.eq.s32.totalorder %s28, 1
      %p88 = por %p86, %p87
      %p89 = scmp.ne.s32.totalorder %s80, %s81
      %p90 = scmp.eq.s32.totalorder %s28, 0
      %p91 = por %p89, %p90
      %p92 = scmp.ne.s32.totalorder %s80, %s81
      %p93 = scmp.eq.s32.totalorder %s29, 1
      %p94 = por %p92, %p93
      %p96 = scmp.ne.s32.totalorder %s81, %s95
      %p97 = scmp.eq.s32.totalorder %s29, 0
      %p98 = por %p96, %p97
      %s100 = sadd.s32 %s99, 1
      %p103 = scmp.eq.s32.totalorder %s23, 1
      %p104 = scmp.ne.s32.totalorder %s99, %s101
      %p105 = scmp.eq.s32.totalorder %s23, 0
      %p106 = por %p104, %p105
      %p107 = scmp.ne.s32.totalorder %s99, %s101
      %p108 = scmp.eq.s32.totalorder %s28, 1
      %p109 = por %p107, %p108
      %p110 = scmp.ne.s32.totalorder %s101, %s102
      %p111 = scmp.eq.s32.totalorder %s28, 0
      %p112 = por %p110, %p111
      %p113 = scmp.ne.s32.totalorder %s101, %s102
      %p114 = scmp.eq.s32.totalorder %s29, 1
      %p115 = por %p113, %p114
      %p117 = scmp.ne.s32.totalorder %s102, %s116
      %p118 = scmp.eq.s32.totalorder %s29, 0
      %p119 = por %p117, %p118
      %s121 = sadd.s32 %s120, 1
      %p124 = scmp.eq.s32.totalorder %s23, 1
      %p125 = scmp.ne.s32.totalorder %s120, %s122
      %p126 = scmp.eq.s32.totalorder %s23, 0
      %p127 = por %p125, %p126
      %p128 = scmp.ne.s32.totalorder %s120, %s122
      %p129 = scmp.eq.s32.totalorder %s28, 1
      %p130 = por %p128, %p129
      %p131 = scmp.ne.s32.totalorder %s122, %s123
      %p132 = scmp.eq.s32.totalorder %s28, 0
      %p133 = por %p131, %p132
      %p134 = scmp.ne.s32.totalorder %s122, %s123
      %p135 = scmp.eq.s32.totalorder %s29, 1
      %p136 = por %p134, %p135
      %p138 = scmp.ne.s32.totalorder %s123, %s137
      %p139 = scmp.eq.s32.totalorder %s29, 0
      %p140 = por %p138, %p139
      %s142 = sadd.s32 %s141, 1
      %p145 = scmp.eq.s32.totalorder %s23, 1
      %p146 = scmp.ne.s32.totalorder %s141, %s143
      %p147 = scmp.eq.s32.totalorder %s23, 0
      %p148 = por %p146, %p147
      %p149 = scmp.ne.s32.totalorder %s141, %s143
      %p150 = scmp.eq.s32.totalorder %s28, 1
      %p151 = por %p149, %p150
      %p152 = scmp.ne.s32.totalorder %s143, %s144
      %p153 = scmp.eq.s32.totalorder %s28, 0
      %p154 = por %p152, %p153
      %p155 = scmp.ne.s32.totalorder %s143, %s144
      %p156 = scmp.eq.s32.totalorder %s29, 1
      %p157 = por %p155, %p156
      %p159 = scmp.ne.s32.totalorder %s144, %s158
      %p160 = scmp.eq.s32.totalorder %s29, 0
      %p161 = por %p159, %p160
      %s163 = sadd.s32 %s162, 1
      %p166 = scmp.eq.s32.totalorder %s23, 1
      %p167 = scmp.ne.s32.totalorder %s162, %s164
      %p168 = scmp.eq.s32.totalorder %s23, 0
      %p169 = por %p167, %p168
      %p170 = scmp.ne.s32.totalorder %s162, %s164
      %p171 = scmp.eq.s32.totalorder %s28, 1
      %p172 = por %p170, %p171
      %p173 = scmp.ne.s32.totalorder %s164, %s165
      %p174 = scmp.eq.s32.totalorder %s28, 0
      %p175 = por %p173, %p174
      %p176 = scmp.ne.s32.totalorder %s164, %s165
      %p177 = scmp.eq.s32.totalorder %s29, 1
      %p178 = por %p176, %p177
      %p180 = scmp.ne.s32.totalorder %s165, %s179
      %p181 = scmp.eq.s32.totalorder %s29, 0
      %p182 = por %p180, %p181
      %s184 = sadd.s32 %s183, 1
      %p187 = scmp.eq.s32.totalorder %s23, 1
      %p188 = scmp.ne.s32.totalorder %s183, %s185
      %p189 = scmp.eq.s32.totalorder %s23, 0
      %p190 = por %p188, %p189
      %p191 = scmp.ne.s32.totalorder %s183, %s185
      %p192 = scmp.eq.s32.totalorder %s28, 1
      %p193 = por %p191, %p192
      %p194 = scmp.ne.s32.totalorder %s185, %s186
      %p195 = scmp.eq.s32.totalorder %s28, 0
      %p196 = por %p194, %p195
      %p197 = scmp.ne.s32.totalorder %s185, %s186
      %p198 = scmp.eq.s32.totalorder %s29, 1
      %p199 = por %p197, %p198
      %p201 = scmp.ne.s32.totalorder %s186, %s200
      %p202 = scmp.eq.s32.totalorder %s29, 0
      %p203 = por %p201, %p202
      %s205 = sadd.s32 %s204, 1
      %p208 = scmp.eq.s32.totalorder %s23, 1
      %p209 = scmp.ne.s32.totalorder %s204, %s206
      %p210 = scmp.eq.s32.totalorder %s23, 0
      %p211 = por %p209, %p210
      %p212 = scmp.ne.s32.totalorder %s204, %s206
      %p213 = scmp.eq.s32.totalorder %s28, 1
      %p214 = por %p212, %p213
      %p215 = scmp.ne.s32.totalorder %s206, %s207
      %p216 = scmp.eq.s32.totalorder %s28, 0
      %p217 = por %p215, %p216
      %p218 = scmp.ne.s32.totalorder %s206, %s207
      %p219 = scmp.eq.s32.totalorder %s29, 1
      %p220 = por %p218, %p219
      %p222 = scmp.ne.s32.totalorder %s207, %s221
      %p223 = scmp.eq.s32.totalorder %s29, 0
      %p224 = por %p222, %p223
      %s225 = ssub.s32 %s23, %s30
      %p226 = scmp.eq.s32.totalorder %s225, 0
      %s228 = sadd.s32 %s227, 1
      %s229 = scalar_select %p226, %s227, %s228
      %p232 = pneg %p226
      %p233 = scmp.eq.s32.totalorder %s23, 1
      %p234 = por %p232, %p233
      %p235 = scmp.ne.s32.totalorder %s227, %s230
      %p236 = scmp.eq.s32.totalorder %s23, 0
      %p237 = por %p235, %p236
      %p238 = scmp.ne.s32.totalorder %s227, %s230
      %p239 = scmp.eq.s32.totalorder %s28, 1
      %p240 = por %p238, %p239
      %p241 = scmp.ne.s32.totalorder %s230, %s231
      %p242 = scmp.eq.s32.totalorder %s28, 0
      %p243 = por %p241, %p242
      %p244 = scmp.ne.s32.totalorder %s230, %s231
      %p245 = scmp.eq.s32.totalorder %s29, 1
      %p246 = por %p244, %p245
      %p248 = scmp.ne.s32.totalorder %s231, %s247
      %p249 = scmp.eq.s32.totalorder %s29, 0
      %p250 = por %p248, %p249
      %p251 = scmp.le.s32.totalorder 1, %s23
      %p252 = scmp.lt.s32.totalorder %s23, 3
      %p253 = pnand %p251, %p252
      %p254 = pneg %p253
      // Predicated region
      $region9: #{tpu_custom_call.1} parent=5 // pred_check
        _
      $region10: #{tpu_custom_call.1} parent=5 // pred_check_branch
        %256 = sbr.rel (%p253) target = $region12
      $region11: #{tpu_custom_call.1} parent=5 // pred_region
        %s257 = ssub.s32 %s23, 1
        // Predicated region
        $region13: #{tpu_custom_call.1} parent=11 // pred_check
          %p258 = pneg %p70
        $region14: #{tpu_custom_call.1} parent=11 // pred_check_branch
          %260 = sbr.rel (%p258) target = $region16
        $region15: #{tpu_custom_call.1} parent=11 // pred_region
          %262 = vsyncadd [#allocation6], 0
          %s263 = sshll.u32 %s1, 4
          %s264 = int_to_ptr.hbm [resolvable:$true] %s263
          %s265 = sshll.u32 [#allocation5], 4
          %s266 = int_to_ptr.vmem [resolvable:$true] %s265
          %271 = dma.hbm_to_vmem [thread:$0]  %s264, 1024, %s266, [#allocation6], 64, 64, 4
        $region16: #{tpu_custom_call.1} parent=11 // pred_fallthru
          _
        // Predicated region
        $region17: #{tpu_custom_call.1} parent=11 // pred_check
          %p272 = pneg %p91
        $region18: #{tpu_custom_call.1} parent=11 // pred_check_branch
          %274 = sbr.rel (%p272) target = $region20
        $region19: #{tpu_custom_call.1} parent=11 // pred_region
          _
        $region20: #{tpu_custom_call.1} parent=11 // pred_fallthru
          _
        // Predicated region
        $region21: #{tpu_custom_call.1} parent=11 // pred_check
          %p275 = pneg %p112
        $region22: #{tpu_custom_call.1} parent=11 // pred_check_branch
          %277 = sbr.rel (%p275) target = $region24
        $region23: #{tpu_custom_call.1} parent=11 // pred_region
          %279 = vsyncadd [#allocation6], 0
          %s280 = sshll.u32 %s3, 4
          %s281 = int_to_ptr.hbm [resolvable:$true] %s280
          %s282 = sshll.u32 [#allocation7], 4
          %s283 = int_to_ptr.vmem [resolvable:$true] %s282
          %288 = dma.hbm_to_vmem [thread:$0]  %s281, 1024, %s283, [#allocation6], 64, 64, 4
        $region24: #{tpu_custom_call.1} parent=11 // pred_fallthru
          _
        // Predicated region
        $region25: #{tpu_custom_call.1} parent=11 // pred_check
          %p289 = pneg %p133
        $region26: #{tpu_custom_call.1} parent=11 // pred_check_branch
          %291 = sbr.rel (%p289) target = $region28
        $region27: #{tpu_custom_call.1} parent=11 // pred_region
          _
        $region28: #{tpu_custom_call.1} parent=11 // pred_fallthru
          _
        // Predicated region
        $region29: #{tpu_custom_call.1} parent=11 // pred_check
          %p292 = pneg %p154
        $region30: #{tpu_custom_call.1} parent=11 // pred_check_branch
          %294 = sbr.rel (%p292) target = $region32
        $region31: #{tpu_custom_call.1} parent=11 // pred_region
          %296 = vsyncadd [#allocation9], 0
          %s297 = sshll.u32 %s5, 4
          %s298 = int_to_ptr.hbm [resolvable:$true] %s297
          %s299 = sshll.u32 [#allocation8], 4
          %s300 = int_to_ptr.vmem [resolvable:$true] %s299
          %305 = dma.hbm_to_vmem [thread:$0]  %s298, 2048, %s300, [#allocation9], 128, 128, 8
        $region32: #{tpu_custom_call.1} parent=11 // pred_fallthru
          _
        // Predicated region
        $region33: #{tpu_custom_call.1} parent=11 // pred_check
          %p306 = pneg %p175
        $region34: #{tpu_custom_call.1} parent=11 // pred_check_branch
          %308 = sbr.rel (%p306) target = $region36
        $region35: #{tpu_custom_call.1} parent=11 // pred_region
          _
        $region36: #{tpu_custom_call.1} parent=11 // pred_fallthru
          _
        // Predicated region
        $region37: #{tpu_custom_call.1} parent=11 // pred_check
          %p309 = pneg %p196
        $region38: #{tpu_custom_call.1} parent=11 // pred_check_branch
          %311 = sbr.rel (%p309) target = $region40
        $region39: #{tpu_custom_call.1} parent=11 // pred_region
          %313 = vsyncadd [#allocation9], 0
          %s314 = sshll.u32 %s7, 4
          %s315 = int_to_ptr.hbm [resolvable:$true] %s314
          %s316 = sshll.u32 [#allocation10], 4
          %s317 = int_to_ptr.vmem [resolvable:$true] %s316
          %322 = dma.hbm_to_vmem [thread:$0]  %s315, 1024, %s317, [#allocation9], 64, 64, 4
        $region40: #{tpu_custom_call.1} parent=11 // pred_fallthru
          _
        // Predicated region
        $region41: #{tpu_custom_call.1} parent=11 // pred_check
          %p323 = pneg %p217
        $region42: #{tpu_custom_call.1} parent=11 // pred_check_branch
          %325 = sbr.rel (%p323) target = $region44
        $region43: #{tpu_custom_call.1} parent=11 // pred_region
          _
        $region44: #{tpu_custom_call.1} parent=11 // pred_fallthru
          _
      $region12: #{tpu_custom_call.1} parent=5 // pred_fallthru
        _
      %p326 = scmp.lt.s32.totalorder %s23, 2
      // Predicated region
      $region45: #{tpu_custom_call.1} parent=5 // pred_check
        %p327 = pneg %p326
      $region46: #{tpu_custom_call.1} parent=5 // pred_check_branch
        %329 = sbr.rel (%p327) target = $region48
      $region47: #{tpu_custom_call.1} parent=5 // pred_region
        // Predicated region
        $region49: #{tpu_custom_call.1} parent=47 // pred_check
          %p330 = pneg %p43
        $region50: #{tpu_custom_call.1} parent=47 // pred_check_branch
          %332 = sbr.rel (%p330) target = $region52
        $region51: #{tpu_custom_call.1} parent=47 // pred_region
          %s333 = sand.u32 %s33, 1
          %s334 = scalar_lea.sflag [#allocation3], %s333
          %s335 = sand.u32 %s33, 1
          %s336 = smul.addr %s335, 16
          %s337 = scalar_lea.vmem [#allocation2], %s336
          %s338 = smul.u32 2, %s23
          %340 = vsyncadd %s334, 0
          %s341 = smul.addr %s338, 8
          %s342 = scalar_lea.hbm %s0, %s341
          %s343 = sshll.u32 %s342, 4
          %s344 = int_to_ptr.hbm [resolvable:$true] %s343
          %s345 = sshll.u32 %s337, 4
          %s346 = int_to_ptr.vmem [resolvable:$true] %s345
          %351 = dma.hbm_to_vmem [thread:$0]  %s344, 256, %s346, %s334, 128, 128, 8
        $region52: #{tpu_custom_call.1} parent=47 // pred_fallthru
          _
      $region48: #{tpu_custom_call.1} parent=5 // pred_fallthru
        _
      %p352 = scmp.le.s32.totalorder 1, %s23
      %p353 = scmp.lt.s32.totalorder %s23, 3
      %p354 = pnand %p352, %p353
      %p355 = pneg %p354
      // Predicated region
      $region53: #{tpu_custom_call.1} parent=5 // pred_check
        _
      $region54: #{tpu_custom_call.1} parent=5 // pred_check_branch
        %357 = sbr.rel (%p354) target = $region56
      $region55: #{tpu_custom_call.1} parent=5 // pred_region
        %s358 = ssub.s32 %s23, 1
        %s359 = sand.u32 %s36, 1
        %s360 = scalar_lea.sflag [#allocation3], %s359
        %s361 = sand.u32 %s36, 1
        %s362 = smul.addr %s361, 16
        %s363 = scalar_lea.vmem [#allocation2], %s362
        // Predicated region
        $region57: #{tpu_custom_call.1} parent=55 // pred_check
          %p364 = pneg %p49
        $region58: #{tpu_custom_call.1} parent=55 // pred_check_branch
          %366 = sbr.rel (%p364) target = $region60
        $region59: #{tpu_custom_call.1} parent=55 // pred_region
          %368 = dma.done %s360, 256
        $region60: #{tpu_custom_call.1} parent=55 // pred_fallthru
          _
        // Predicated region
        $region61: #{tpu_custom_call.1} parent=55 // pred_check
          %p369 = pneg %p70
        $region62: #{tpu_custom_call.1} parent=55 // pred_check_branch
          %371 = sbr.rel (%p369) target = $region64
        $region63: #{tpu_custom_call.1} parent=55 // pred_region
          %373 = dma.done [#allocation6], 1024
        $region64: #{tpu_custom_call.1} parent=55 // pred_fallthru
          _
        // Predicated region
        $region65: #{tpu_custom_call.1} parent=55 // pred_check
          %p374 = pneg %p112
        $region66: #{tpu_custom_call.1} parent=55 // pred_check_branch
          %376 = sbr.rel (%p374) target = $region68
        $region67: #{tpu_custom_call.1} parent=55 // pred_region
          %378 = dma.done [#allocation6], 1024
        $region68: #{tpu_custom_call.1} parent=55 // pred_fallthru
          _
        // Predicated region
        $region69: #{tpu_custom_call.1} parent=55 // pred_check
          %p379 = pneg %p154
        $region70: #{tpu_custom_call.1} parent=55 // pred_check_branch
          %381 = sbr.rel (%p379) target = $region72
        $region71: #{tpu_custom_call.1} parent=55 // pred_region
          %383 = dma.done [#allocation9], 2048
        $region72: #{tpu_custom_call.1} parent=55 // pred_fallthru
          _
        // Predicated region
        $region73: #{tpu_custom_call.1} parent=55 // pred_check
          %p384 = pneg %p196
        $region74: #{tpu_custom_call.1} parent=55 // pred_check_branch
          %386 = sbr.rel (%p384) target = $region76
        $region75: #{tpu_custom_call.1} parent=55 // pred_region
          %388 = dma.done [#allocation9], 1024
        $region76: #{tpu_custom_call.1} parent=55 // pred_fallthru
          _
        %s389 = sand.u32 %s36, 1
        %s390 = scalar_lea.sflag [#allocation3], %s389
        %s391 = sand.u32 %s36, 1
        %s392 = smul.addr %s391, 16
        %s393 = scalar_lea.vmem [#allocation2], %s392
        %p394 = pneg %p49
        %p395 = pneg %p46
        %p396 = pneg %p70
        %p397 = pneg %p67
        %p398 = pneg %p91
        %p399 = pneg %p88
        %p400 = pneg %p112
        %p401 = pneg %p109
        %p402 = pneg %p133
        %p403 = pneg %p130
        %p404 = pneg %p154
        %p405 = pneg %p151
        %p406 = pneg %p175
        %p407 = pneg %p172
        %p408 = pneg %p196
        %p409 = pneg %p193
        %p410 = pneg %p217
        %p411 = pneg %p214
        %p412 = pneg %p243
        %p413 = pneg %p240
        %s414 = sand.u32 %s230, 1
        %s415 = scalar_lea.sflag [#allocation4], %s414
        %s416 = sand.u32 %s230, 1
        %s417 = smul.addr %s416, 16
        %s418 = scalar_lea.vmem [#allocation11], %s417
        %s419 = smul.u32 2, %s28
        %s420 = smul.u32 2, %s28
        %v421 = vld [vmem:[%s363] sm:$0xff]
        %v422 = vld [vmem:[%s363 + $0x8] sm:$0xff]
        %v423 = vpack.c.bf16 %v422, %v421
        %v424 = vld [vmem:[#allocation5] sm:$0xf]
        %v425 = vld [vmem:[#allocation5 + $0x4] sm:$0xf]
        %v426 = vld [vmem:[#allocation5 + $0x8] sm:$0xf]
        %v427 = vld [vmem:[#allocation5 + $0xc] sm:$0xf]
        %v428 = vld [vmem:[#allocation5 + $0x10] sm:$0xf]
        %v429 = vld [vmem:[#allocation5 + $0x14] sm:$0xf]
        %v430 = vld [vmem:[#allocation5 + $0x18] sm:$0xf]
        %v431 = vld [vmem:[#allocation5 + $0x1c] sm:$0xf]
        %v432 = vld [vmem:[#allocation5 + $0x20] sm:$0xf]
        %v433 = vld [vmem:[#allocation5 + $0x24] sm:$0xf]
        %v434 = vld [vmem:[#allocation5 + $0x28] sm:$0xf]
        %v435 = vld [vmem:[#allocation5 + $0x2c] sm:$0xf]
        %v436 = vld [vmem:[#allocation5 + $0x30] sm:$0xf]
        %v437 = vld [vmem:[#allocation5 + $0x34] sm:$0xf]
        %v438 = vld [vmem:[#allocation5 + $0x38] sm:$0xf]
        %v439 = vld [vmem:[#allocation5 + $0x3c] sm:$0xf]
        %v440 = vld [vmem:[%s2] sm:$0x1]
        %v442 = vperm.slane %v440, 0
        %v460 = vunpack.c.l.b16 %v424
        %v461 = vunpack.c.l.b16 %v425
        %v462 = vunpack.c.l.b16 %v426
        %v463 = vunpack.c.l.b16 %v427
        %v464 = vunpack.c.l.b16 %v428
        %v465 = vunpack.c.l.b16 %v429
        %v466 = vunpack.c.l.b16 %v430
        %v467 = vunpack.c.l.b16 %v431
        %v468 = vunpack.c.l.b16 %v432
        %v469 = vunpack.c.l.b16 %v433
        %v470 = vunpack.c.l.b16 %v434
        %v471 = vunpack.c.l.b16 %v435
        %v472 = vunpack.c.l.b16 %v436
        %v473 = vunpack.c.l.b16 %v437
        %v474 = vunpack.c.l.b16 %v438
        %v475 = vunpack.c.l.b16 %v439
        %v476 = vpack.c.b16 %v461, %v460
        %v477 = vpack.c.b16 %v463, %v462
        %v478 = vpack.c.b16 %v465, %v464
        %v479 = vpack.c.b16 %v467, %v466
        %v480 = vpack.c.b16 %v469, %v468
        %v481 = vpack.c.b16 %v471, %v470
        %v482 = vpack.c.b16 %v473, %v472
        %v483 = vpack.c.b16 %v475, %v474
        %492 = vmatpush.bf16.msra.mxu0 %v483
        %493 = vmatpush.bf16.msra.mxu0 %v482
        %494 = vmatpush.bf16.msra.mxu0 %v481
        %495 = vmatpush.bf16.msra.mxu0 %v480
        %496 = vmatpush.bf16.msra.mxu0 %v479
        %497 = vmatpush.bf16.msra.mxu0 %v478
        %498 = vmatpush.bf16.msra.mxu0 %v477
        %499 = vmatpush.bf16.msra.mxu0 %v476
        %500 = vmatmul.bf16.gmra.mxu0 %v423
        %v501 = vpop.f32.mrf.mxu0
        %v502 = vadd.f32 %v442, %v501
        %v503 = vpop.f32.mrf.mxu0
        %v504 = vadd.f32 %v442, %v503
        %505 = vdwg.mxu0
        %v506 = vmax.f32 %v502, 0.0
        %v507 = vmax.f32 %v504, 0.0
        %v508 = vpack.c.bf16 %v507, %v506
        %v509 = vld [vmem:[#allocation7] sm:$0xf]
        %v510 = vld [vmem:[#allocation7 + $0x4] sm:$0xf]
        %v511 = vld [vmem:[#allocation7 + $0x8] sm:$0xf]
        %v512 = vld [vmem:[#allocation7 + $0xc] sm:$0xf]
        %v513 = vld [vmem:[#allocation7 + $0x10] sm:$0xf]
        %v514 = vld [vmem:[#allocation7 + $0x14] sm:$0xf]
        %v515 = vld [vmem:[#allocation7 + $0x18] sm:$0xf]
        %v516 = vld [vmem:[#allocation7 + $0x1c] sm:$0xf]
        %v517 = vld [vmem:[#allocation7 + $0x20] sm:$0xf]
        %v518 = vld [vmem:[#allocation7 + $0x24] sm:$0xf]
        %v519 = vld [vmem:[#allocation7 + $0x28] sm:$0xf]
        %v520 = vld [vmem:[#allocation7 + $0x2c] sm:$0xf]
        %v521 = vld [vmem:[#allocation7 + $0x30] sm:$0xf]
        %v522 = vld [vmem:[#allocation7 + $0x34] sm:$0xf]
        %v523 = vld [vmem:[#allocation7 + $0x38] sm:$0xf]
        %v524 = vld [vmem:[#allocation7 + $0x3c] sm:$0xf]
        %v525 = vld [vmem:[%s4] sm:$0x1]
        %v527 = vperm.slane %v525, 0
        %v545 = vunpack.c.l.b16 %v509
        %v546 = vunpack.c.l.b16 %v510
        %v547 = vunpack.c.l.b16 %v511
        %v548 = vunpack.c.l.b16 %v512
        %v549 = vunpack.c.l.b16 %v513
        %v550 = vunpack.c.l.b16 %v514
        %v551 = vunpack.c.l.b16 %v515
        %v552 = vunpack.c.l.b16 %v516
        %v553 = vunpack.c.l.b16 %v517
        %v554 = vunpack.c.l.b16 %v518
        %v555 = vunpack.c.l.b16 %v519
        %v556 = vunpack.c.l.b16 %v520
        %v557 = vunpack.c.l.b16 %v521
        %v558 = vunpack.c.l.b16 %v522
        %v559 = vunpack.c.l.b16 %v523
        %v560 = vunpack.c.l.b16 %v524
        %v561 = vpack.c.b16 %v546, %v545
        %v562 = vpack.c.b16 %v548, %v547
        %v563 = vpack.c.b16 %v550, %v549
        %v564 = vpack.c.b16 %v552, %v551
        %v565 = vpack.c.b16 %v554, %v553
        %v566 = vpack.c.b16 %v556, %v555
        %v567 = vpack.c.b16 %v558, %v557
        %v568 = vpack.c.b16 %v560, %v559
        %577 = vmatpush.bf16.msra.mxu0 %v568
        %578 = vmatpush.bf16.msra.mxu0 %v567
        %579 = vmatpush.bf16.msra.mxu0 %v566
        %580 = vmatpush.bf16.msra.mxu0 %v565
        %581 = vmatpush.bf16.msra.mxu0 %v564
        %582 = vmatpush.bf16.msra.mxu0 %v563
        %583 = vmatpush.bf16.msra.mxu0 %v562
        %584 = vmatpush.bf16.msra.mxu0 %v561
        %585 = vmatmul.bf16.gmra.mxu0 %v508
        %v586 = vpop.f32.mrf.mxu0
        %v587 = vadd.f32 %v527, %v586
        %v588 = vpop.f32.mrf.mxu0
        %v589 = vadd.f32 %v527, %v588
        %590 = vdwg.mxu0
        %v591 = vld [vmem:[#allocation8] sm:$0xff]
        %v592 = vld [vmem:[#allocation8 + $0x8] sm:$0xff]
        %v593 = vld [vmem:[#allocation8 + $0x10] sm:$0xff]
        %v594 = vld [vmem:[#allocation8 + $0x18] sm:$0xff]
        %v595 = vld [vmem:[#allocation8 + $0x20] sm:$0xff]
        %v596 = vld [vmem:[#allocation8 + $0x28] sm:$0xff]
        %v597 = vld [vmem:[#allocation8 + $0x30] sm:$0xff]
        %v598 = vld [vmem:[#allocation8 + $0x38] sm:$0xff]
        %v599 = vld [vmem:[#allocation8 + $0x40] sm:$0xff]
        %v600 = vld [vmem:[#allocation8 + $0x48] sm:$0xff]
        %v601 = vld [vmem:[#allocation8 + $0x50] sm:$0xff]
        %v602 = vld [vmem:[#allocation8 + $0x58] sm:$0xff]
        %v603 = vld [vmem:[#allocation8 + $0x60] sm:$0xff]
        %v604 = vld [vmem:[#allocation8 + $0x68] sm:$0xff]
        %v605 = vld [vmem:[#allocation8 + $0x70] sm:$0xff]
        %v606 = vld [vmem:[#allocation8 + $0x78] sm:$0xff]
        %v607 = vld [vmem:[%s6] sm:$0x1]
        %v609 = vperm.slane %v607, 0
        %611 = vmatpush.msra.mxu0 %v606
        %612 = vmatpush.msra.mxu0 %v605
        %613 = vmatpush.msra.mxu0 %v604
        %614 = vmatpush.msra.mxu0 %v603
        %615 = vmatpush.msra.mxu0 %v602
        %616 = vmatpush.msra.mxu0 %v601
        %617 = vmatpush.msra.mxu0 %v600
        %618 = vmatpush.msra.mxu0 %v599
        %619 = vmatpush.msra.mxu0 %v598
        %620 = vmatpush.msra.mxu0 %v597
        %621 = vmatpush.msra.mxu0 %v596
        %622 = vmatpush.msra.mxu0 %v595
        %623 = vmatpush.msra.mxu0 %v594
        %624 = vmatpush.msra.mxu0 %v593
        %625 = vmatpush.msra.mxu0 %v592
        %626 = vmatpush.msra.mxu0 %v591
        %627 = vmatmul.f32.gmra.mxu0 %v587
        %v628 = vpop.f32.mrf.mxu0
        %v629 = vadd.f32 %v609, %v628
        %630 = vmatmul.f32.gmra.mxu0 %v589
        %v631 = vpop.f32.mrf.mxu0
        %v632 = vadd.f32 %v609, %v631
        %633 = vdwg.mxu0
        %v634 = vmax.f32 %v629, 0.0
        %v635 = vmax.f32 %v632, 0.0
        %v636 = vpack.c.bf16 %v635, %v634
        %v637 = vld [vmem:[#allocation10] sm:$0xf]
        %v638 = vld [vmem:[#allocation10 + $0x4] sm:$0xf]
        %v639 = vld [vmem:[#allocation10 + $0x8] sm:$0xf]
        %v640 = vld [vmem:[#allocation10 + $0xc] sm:$0xf]
        %v641 = vld [vmem:[#allocation10 + $0x10] sm:$0xf]
        %v642 = vld [vmem:[#allocation10 + $0x14] sm:$0xf]
        %v643 = vld [vmem:[#allocation10 + $0x18] sm:$0xf]
        %v644 = vld [vmem:[#allocation10 + $0x1c] sm:$0xf]
        %v645 = vld [vmem:[#allocation10 + $0x20] sm:$0xf]
        %v646 = vld [vmem:[#allocation10 + $0x24] sm:$0xf]
        %v647 = vld [vmem:[#allocation10 + $0x28] sm:$0xf]
        %v648 = vld [vmem:[#allocation10 + $0x2c] sm:$0xf]
        %v649 = vld [vmem:[#allocation10 + $0x30] sm:$0xf]
        %v650 = vld [vmem:[#allocation10 + $0x34] sm:$0xf]
        %v651 = vld [vmem:[#allocation10 + $0x38] sm:$0xf]
        %v652 = vld [vmem:[#allocation10 + $0x3c] sm:$0xf]
        %v653 = vld [vmem:[%s8] sm:$0x1]
        %v655 = vperm.slane %v653, 0
        %v673 = vunpack.c.l.b16 %v637
        %v674 = vunpack.c.l.b16 %v638
        %v675 = vunpack.c.l.b16 %v639
        %v676 = vunpack.c.l.b16 %v640
        %v677 = vunpack.c.l.b16 %v641
        %v678 = vunpack.c.l.b16 %v642
        %v679 = vunpack.c.l.b16 %v643
        %v680 = vunpack.c.l.b16 %v644
        %v681 = vunpack.c.l.b16 %v645
        %v682 = vunpack.c.l.b16 %v646
        %v683 = vunpack.c.l.b16 %v647
        %v684 = vunpack.c.l.b16 %v648
        %v685 = vunpack.c.l.b16 %v649
        %v686 = vunpack.c.l.b16 %v650
        %v687 = vunpack.c.l.b16 %v651
        %v688 = vunpack.c.l.b16 %v652
        %v689 = vpack.c.b16 %v674, %v673
        %v690 = vpack.c.b16 %v676, %v675
        %v691 = vpack.c.b16 %v678, %v677
        %v692 = vpack.c.b16 %v680, %v679
        %v693 = vpack.c.b16 %v682, %v681
        %v694 = vpack.c.b16 %v684, %v683
        %v695 = vpack.c.b16 %v686, %v685
        %v696 = vpack.c.b16 %v688, %v687
        %705 = vmatpush.bf16.msra.mxu0 %v696
        %706 = vmatpush.bf16.msra.mxu0 %v695
        %707 = vmatpush.bf16.msra.mxu0 %v694
        %708 = vmatpush.bf16.msra.mxu0 %v693
        %709 = vmatpush.bf16.msra.mxu0 %v692
        %710 = vmatpush.bf16.msra.mxu0 %v691
        %711 = vmatpush.bf16.msra.mxu0 %v690
        %712 = vmatpush.bf16.msra.mxu0 %v689
        %713 = vmatmul.bf16.gmra.mxu0 %v636
        %v714 = vpop.f32.mrf.mxu0
        %v715 = vadd.f32 %v655, %v714
        %v716 = vpop.f32.mrf.mxu0
        %v717 = vadd.f32 %v655, %v716
        %718 = vdwg.mxu0
        %719 = vst [vmem:[%s418] sm:$0xff] %v715
        %720 = vst [vmem:[%s418 + $0x8] sm:$0xff] %v717
        %s721 = sand.u32 %s230, 1
        %s722 = scalar_lea.sflag [#allocation4], %s721
        %s723 = sand.u32 %s230, 1
        %s724 = smul.addr %s723, 16
        %s725 = scalar_lea.vmem [#allocation11], %s724
        // Predicated region
        $region77: #{tpu_custom_call.1} parent=55 // pred_check
          %p726 = pneg %p240
        $region78: #{tpu_custom_call.1} parent=55 // pred_check_branch
          %728 = sbr.rel (%p726) target = $region80
        $region79: #{tpu_custom_call.1} parent=55 // pred_region
          %s729 = smul.u32 2, %s28
          %731 = vsyncadd %s722, 0
          %s732 = smul.addr %s729, 8
          %s733 = scalar_lea.hbm %s9, %s732
          %s734 = sshll.u32 %s725, 4
          %s735 = int_to_ptr.vmem [resolvable:$true] %s734
          %s736 = sshll.u32 %s733, 4
          %s737 = int_to_ptr.hbm [resolvable:$true] %s736
          %742 = dma.vmem_to_hbm [thread:$0]  %s735, 256, %s737, %s722, 128, 128, 8
        $region80: #{tpu_custom_call.1} parent=55 // pred_fallthru
          _
      $region56: #{tpu_custom_call.1} parent=5 // pred_fallthru
        _
      %p743 = scmp.le.s32.totalorder 2, %s23
      // Predicated region
      $region81: #{tpu_custom_call.1} parent=5 // pred_check
        %p744 = pneg %p743
      $region82: #{tpu_custom_call.1} parent=5 // pred_check_branch
        %746 = sbr.rel (%p744) target = $region84
      $region83: #{tpu_custom_call.1} parent=5 // pred_region
        %s747 = ssub.s32 %s23, 2
        // Predicated region
        $region85: #{tpu_custom_call.1} parent=83 // pred_check
          %p748 = pneg %p246
        $region86: #{tpu_custom_call.1} parent=83 // pred_check_branch
          %750 = sbr.rel (%p748) target = $region88
        $region87: #{tpu_custom_call.1} parent=83 // pred_region
          %s751 = sand.u32 %s231, 1
          %s752 = scalar_lea.sflag [#allocation4], %s751
          %s753 = sand.u32 %s231, 1
          %s754 = smul.addr %s753, 16
          %s755 = scalar_lea.vmem [#allocation11], %s754
          %757 = dma.done %s752, 256
        $region88: #{tpu_custom_call.1} parent=83 // pred_fallthru
          _
      $region84: #{tpu_custom_call.1} parent=5 // pred_fallthru
        _
    $region6: #{tpu_custom_call.1} parent=1 // loop_footer
      %s27 = sadd.s32 1, %s23
    $region7: #{tpu_custom_call.1} parent=1 // loop_footer_branch
      %22 = sbr.rel target = $region3
    $region8: #{tpu_custom_call.1} parent=1 // loop_exit
      _
    %758 = vsyncpa [#allocation3], 1
    %s759 = scalar_lea.sflag [#allocation3], 1
    %760 = vsyncpa %s759, 1
    %761 = vsyncpa [#allocation6], 1
    %762 = vsyncpa [#allocation9], 1
    %763 = vsyncpa [#allocation4], 1
    %s764 = scalar_lea.sflag [#allocation4], 1
    %765 = vsyncpa %s764, 1

</llo_original>
